<compile_context>
chip_gen: v6e
topology: v6e:2x2x1
jax: 0.10.0
libtpu: 0.0.40
codegen_flags: <defaults>
</compile_context>

<pallas_src>
import jax
import jax.numpy as jnp
import numpy as np
from jax.experimental import pallas as pl
from jax.experimental.pallas import tpu as pltpu


def _round_up(n, m):
    return ((n + m - 1) // m) * m


# ----------------------------- Pallas kernel --------------------------------
def _enc_mu_kernel(x_ref, w1_ref, b1_ref, w2_ref, b2_ref, mu_ref):
    # x_ref : (TB, D) f32   w1_ref: (D, H) f32   b1_ref: (1, H) f32
    # w2_ref: (H, L)  f32   b2_ref: (1, L) f32   mu_ref: (TB, L) f32
    # First matmul on the MXU, f32 accumulation.
    h = jnp.dot(x_ref[...], w1_ref[...], preferred_element_type=jnp.float32)
    # Bias + ReLU epilogue in f32 (v5e VPU has no bf16 path).
    h = jnp.maximum(h + b1_ref[...], 0.0)
    # Second (mu-only) matmul: logvar columns are never computed.
    mu_ref[...] = (
        jnp.dot(h, w2_ref[...], preferred_element_type=jnp.float32) + b2_ref[...]
    )


def _choose_batch_tile(B, block_b):
    """Batch tile: full extent if the batch is tiny (a full-extent block is
    always layout-legal), otherwise a multiple of 16 capped so the grid has
    at least 2 steps so both v7x TensorCores get work."""
    if B <= 16:
        return B
    tb = min(int(block_b), _round_up(pl.cdiv(B, 2), 16))
    return max(16, _round_up(tb, 16))


# ------------------------------ pallas wrapper --------------------------------
def enc_mu_pallas(x_flat, w1, b1, w2_mu, b2_mu, *, block_b=1024):
    """mu = relu(x @ w1 + b1) @ w2_mu + b2_mu, batch-tiled on a 1-D grid.

    Weights/biases use constant index_maps so they stay VMEM-resident across
    grid steps; only the x / mu tiles stream from/to HBM per step.
    """
    B, D = x_flat.shape
    H = w1.shape[1]
    latent = w2_mu.shape[1]
    assert w2_mu.shape[0] == H and b1.shape == (1, H) and b2_mu.shape == (1, latent)

    tb = _choose_batch_tile(B, block_b)
    grid = (pl.cdiv(B, tb),)  # partial last block is fine: rows are independent

    # VMEM budget: the pipeline double-buffers every operand, including the
    # constant-index_map weights, so count 2x for all of them.
    vmem_bytes = 2 * (
        tb * D * 4 + tb * latent * 4        # streamed x tile + mu tile
        + D * H * 4 + H * latent * 4        # weights (resident, still 2 bufs)
        + H * 4 + latent * 4                # biases
    )
    vmem_limit = int(min(max(2 * vmem_bytes, 4 << 20), 48 << 20))

    cost = pl.CostEstimate(
        flops=2 * B * D * H + 2 * B * H * latent,
        transcendentals=0,
        bytes_accessed=(B * D * 4 + D * H * 4 + H * latent * 4
                        + H * 4 + latent * 4 + B * latent * 4),
    )

    return pl.pallas_call(
        _enc_mu_kernel,
        out_shape=jax.ShapeDtypeStruct((B, latent), jnp.float32),
        grid=grid,
        in_specs=[
            pl.BlockSpec((tb, D), lambda i: (i, 0)),        # x: batch-tiled
            pl.BlockSpec((D, H), lambda i: (0, 0)),         # w1: VMEM-resident
            pl.BlockSpec((1, H), lambda i: (0, 0)),         # b1
            pl.BlockSpec((H, latent), lambda i: (0, 0)),    # w2 (mu cols only)
            pl.BlockSpec((1, latent), lambda i: (0, 0)),    # b2 (mu cols only)
        ],
        out_specs=pl.BlockSpec((tb, latent), lambda i: (i, 0)),
        compiler_params=pltpu.CompilerParams(
            dimension_semantics=("parallel",),              # 2 TCs on v7x
            vmem_limit_bytes=vmem_limit,
        ),
        cost_estimate=cost,
    )(x_flat.astype(jnp.float32), w1, b1, w2_mu, b2_mu)


# --------------------------- one-time param setup ------------------------------
def make_encoder(w1, b1, w2, b2, *, block_b=1024):
    """Hoists per-call weight prep (mu-column slice, dtype normalization) out of
    the forward path and returns a jitted enc_fn compatible with Enc.

    Assumes the wrapped pvae encoder packs (mu, logvar) along the last axis of
    its second Linear layer; Enc.forward discards logvar, so those columns are
    dropped here once, at setup.
    """
    latent = w2.shape[1] // 2
    w1 = jnp.asarray(w1, jnp.float32)
    b1 = jnp.asarray(b1, jnp.float32).reshape(1, -1)
    w2_mu = jnp.asarray(w2[:, :latent], jnp.float32)
    b2_mu = jnp.asarray(b2[:, :latent], jnp.float32).reshape(1, -1)

    @jax.jit
    def enc_fn(x_nchw):
        x_flat = x_nchw.reshape(x_nchw.shape[0], -1)  # glue reshape in plain JAX
        mu = enc_mu_pallas(x_flat, w1, b1, w2_mu, b2_mu, block_b=block_b)
        return (mu,)  # tuple: element 0 is mu, matching enc(x)[0]

    return enc_fn


# ------------------------------ Enc wrapper -----------------------------------
class Enc:
    """JAX/Pallas port of pvae.models.enc.Enc: forward(x) = enc(x)[0]."""

    def __init__(self, enc_fn, data_size):
        self.enc = enc_fn
        self.modelName = None
        self.data_size = data_size

    def getDataLoaders(self, *args, **kwargs):
        # TODO(synk): data-loading utility, no Pallas equivalent (as in original).
        raise NotImplementedError

    def forward(self, x):
        encoder_result_raw = self.enc(x)   # tuple; element 0 is mu
        encoder_result = encoder_result_raw[0]
        return encoder_result

    __call__ = forward


# --------------------------------- main ---------------------------------------
if __name__ == "__main__":
    # Small shapes consistent with the module: NCHW image input.
    B, C, H, W = 2, 4, 16, 16          # data_size = (C, H, W)
    D = C * H * W                      # flattened data dim = 1024
    HIDDEN = 32
    LATENT = 16

    key = jax.random.PRNGKey(0)
    kx, k1, k2, k3, k4 = jax.random.split(key, 5)

    x = jax.random.normal(kx, (B, C, H, W), dtype=jnp.float32)

    # Deterministic parameter init (PyTorch nn.Linear-style uniform ±1/sqrt(fan_in)).
    lim1 = 1.0 / jnp.sqrt(jnp.float32(D))
    lim2 = 1.0 / jnp.sqrt(jnp.float32(HIDDEN))
    w1 = jax.random.uniform(k1, (D, HIDDEN), jnp.float32, -lim1, lim1)
    b1 = jax.random.uniform(k2, (1, HIDDEN), jnp.float32, -lim1, lim1)
    w2 = jax.random.uniform(k3, (HIDDEN, 2 * LATENT), jnp.float32, -lim2, lim2)
    b2 = jax.random.uniform(k4, (1, 2 * LATENT), jnp.float32, -lim2, lim2)

    # One-time weight prep + jitted forward; Enc wraps it like the PyTorch module.
    enc_fn = make_encoder(w1, b1, w2, b2)
    model = Enc(enc_fn, data_size=(C, H, W))

    mu = model(x)
    jax.block_until_ready(mu)

    # Cross-check against a float64 host reference of the f32 math.
    xr = np.asarray(jax.device_get(x), dtype=np.float64).reshape(B, -1)
    w1r = np.asarray(jax.device_get(w1), dtype=np.float64)
    b1r = np.asarray(jax.device_get(b1), dtype=np.float64)
    w2r = np.asarray(jax.device_get(w2), dtype=np.float64)
    b2r = np.asarray(jax.device_get(b2), dtype=np.float64)
    h_ref = np.maximum(xr @ w1r + b1r, 0.0)
    mu_ref = h_ref @ w2r[:, :LATENT] + b2r[:, :LATENT]

    mu_np = np.asarray(jax.device_get(mu))
    assert mu_np.shape == (B, LATENT)
    assert np.allclose(mu_np, mu_ref, atol=1e-2, rtol=1e-2)

    print("KERNEL_OK")
</pallas_src>

<mosaic_0001>
module attributes {stable_mosaic.version = 11 : i64} {
  func.func @_enc_mu_kernel(%arg0: i32, %arg1: memref<2x1024xf32, #tpu.memory_space<vmem>>, %arg2: memref<1024x32xf32, #tpu.memory_space<vmem>>, %arg3: memref<1x32xf32, #tpu.memory_space<vmem>>, %arg4: memref<32x16xf32, #tpu.memory_space<vmem>>, %arg5: memref<1x16xf32, #tpu.memory_space<vmem>>, %arg6: memref<2x16xf32, #tpu.memory_space<vmem>>) attributes {dimension_semantics = [#tpu.dimension_semantics<parallel>], iteration_bounds = array<i64: 1>, scalar_prefetch = 0 : i64, scratch_operands = 0 : i64, tpu.core_type = #tpu.core_type<tc>, window_params = [{transform_indices = @transform_0, window_bounds = array<i64: 2, 1024>}, {pipeline_mode = #tpu.pipeline_mode<synchronous>, transform_indices = @transform_1, window_bounds = array<i64: 1024, 32>}, {pipeline_mode = #tpu.pipeline_mode<synchronous>, transform_indices = @transform_2, window_bounds = array<i64: 1, 32>}, {pipeline_mode = #tpu.pipeline_mode<synchronous>, transform_indices = @transform_3, window_bounds = array<i64: 32, 16>}, {pipeline_mode = #tpu.pipeline_mode<synchronous>, transform_indices = @transform_4, window_bounds = array<i64: 1, 16>}, {transform_indices = @transform_5, window_bounds = array<i64: 2, 16>}]} {
    %c0 = arith.constant 0 : index
    %c0_0 = arith.constant 0 : index
    %0 = vector.load %arg1[%c0, %c0_0] : memref<2x1024xf32, #tpu.memory_space<vmem>>, vector<2x1024xf32>
    %c0_1 = arith.constant 0 : index
    %c0_2 = arith.constant 0 : index
    %1 = vector.load %arg2[%c0_1, %c0_2] : memref<1024x32xf32, #tpu.memory_space<vmem>>, vector<1024x32xf32>
    %cst = arith.constant dense<0.000000e+00> : vector<2x32xf32>
    %2 = tpu.matmul %0, %1, %cst {dimension_numbers = #tpu.dot_dimension_numbers<[1], [0], [0], [1], [0, 0, 1, 1], [], []>} : vector<2x1024xf32>, vector<1024x32xf32>, vector<2x32xf32> -> vector<2x32xf32>
    %c0_3 = arith.constant 0 : index
    %c0_4 = arith.constant 0 : index
    %3 = vector.load %arg3[%c0_3, %c0_4] : memref<1x32xf32, #tpu.memory_space<vmem>>, vector<1x32xf32>
    %4 = vector.broadcast %3 : vector<1x32xf32> to vector<2x32xf32>
    %5 = arith.addf %2, %4 : vector<2x32xf32>
    %cst_5 = arith.constant 0.000000e+00 : f32
    %6 = vector.broadcast %cst_5 : f32 to vector<2x32xf32>
    %7 = arith.maximumf %5, %6 : vector<2x32xf32>
    %c0_6 = arith.constant 0 : index
    %c0_7 = arith.constant 0 : index
    %8 = vector.load %arg4[%c0_6, %c0_7] : memref<32x16xf32, #tpu.memory_space<vmem>>, vector<32x16xf32>
    %cst_8 = arith.constant dense<0.000000e+00> : vector<2x16xf32>
    %9 = tpu.matmul %7, %8, %cst_8 {dimension_numbers = #tpu.dot_dimension_numbers<[1], [0], [0], [1], [0, 0, 1, 1], [], []>} : vector<2x32xf32>, vector<32x16xf32>, vector<2x16xf32> -> vector<2x16xf32>
    %c0_9 = arith.constant 0 : index
    %c0_10 = arith.constant 0 : index
    %10 = vector.load %arg5[%c0_9, %c0_10] : memref<1x16xf32, #tpu.memory_space<vmem>>, vector<1x16xf32>
    %11 = vector.broadcast %10 : vector<1x16xf32> to vector<2x16xf32>
    %12 = arith.addf %9, %11 : vector<2x16xf32>
    %c0_11 = arith.constant 0 : index
    %c0_12 = arith.constant 0 : index
    %13 = vector.load %arg6[%c0_11, %c0_12] : memref<2x16xf32, #tpu.memory_space<vmem>>, vector<2x16xf32>
    tpu.vector_store %arg6[%c0_11, %c0_12], %12 {strides = array<i32>} : memref<2x16xf32, #tpu.memory_space<vmem>>, vector<2x16xf32>,
    return
  }
  func.func @transform_0(%arg0: i32) -> (i32, i32) {
    %c0_i32 = arith.constant 0 : i32
    %c0_i32_0 = arith.constant 0 : i32
    return %arg0, %c0_i32 : i32, i32
  }
  func.func @transform_1(%arg0: i32) -> (i32, i32) {
    %c0_i32 = arith.constant 0 : i32
    %c0_i32_0 = arith.constant 0 : i32
    %c0_i32_1 = arith.constant 0 : i32
    return %c0_i32, %c0_i32_0 : i32, i32
  }
  func.func @transform_2(%arg0: i32) -> (i32, i32) {
    %c0_i32 = arith.constant 0 : i32
    %c0_i32_0 = arith.constant 0 : i32
    %c0_i32_1 = arith.constant 0 : i32
    return %c0_i32, %c0_i32_0 : i32, i32
  }
  func.func @transform_3(%arg0: i32) -> (i32, i32) {
    %c0_i32 = arith.constant 0 : i32
    %c0_i32_0 = arith.constant 0 : i32
    %c0_i32_1 = arith.constant 0 : i32
    return %c0_i32, %c0_i32_0 : i32, i32
  }
  func.func @transform_4(%arg0: i32) -> (i32, i32) {
    %c0_i32 = arith.constant 0 : i32
    %c0_i32_0 = arith.constant 0 : i32
    %c0_i32_1 = arith.constant 0 : i32
    return %c0_i32, %c0_i32_0 : i32, i32
  }
  func.func @transform_5(%arg0: i32) -> (i32, i32) {
    %c0_i32 = arith.constant 0 : i32
    %c0_i32_0 = arith.constant 0 : i32
    return %arg0, %c0_i32 : i32, i32
  }
}

</mosaic_0001>

<llo_original>
// kernel: enc_fn.1
$region0: #{enc_fn.1}
  #allocation0 [shape = 'u32[]', space=smem, size = 0x4, offset = 0x4, fixed_abs, tag = 'smem constant byte address 0x4 - core index']
  #allocation1 [shape = 'u32[144,128]{1,0:T(1,128)}', space=vmem, size = 0x12000, scoped, tag = 'internal scratch']
  %s0 = inlined_call_operand.vmem [shape: f32[2,1024], index: 0, kind: input, shape index: {}]
  %s1 = inlined_call_operand.hbm [shape: f32[1024,32], index: 1, kind: input, shape index: {}]
  %s2 = inlined_call_operand.vmem [shape: f32[1,32], index: 2, kind: input, shape index: {}]
  %s3 = inlined_call_operand.vmem [shape: f32[32,16], index: 3, kind: input, shape index: {}]
  %s4 = inlined_call_operand.vmem [shape: f32[1,16], index: 4, kind: input, shape index: {}]
  %s5 = inlined_call_operand.hbm [shape: f32[2,16], index: 5, kind: output, shape index: {}]
  %s6 = sld [smem:[#allocation0]]
  $region34: #{enc_fn.1} parent=0
    _
  %s8 = ssub.s32 1, %s6
  %s9 = scalar_select 0, %s8, %s6
  $region1: #{enc_fn.1} parent=0
    #allocation2 [shape = 'u8[524288]{0}', space=vmem, size = 0x80000, scoped, tag = 'input window, operand 1, single buffered']
    #allocation3 [shape = 's32[1]{0}', space=sflag, size = 0x4, scoped, tag = 'scoped memory for enc_fn.1']
    #allocation4 [shape = 's32[1]{0}', space=sflag, size = 0x4, scoped, tag = 'scoped memory for enc_fn.1']
    #allocation5 [shape = 'u8[1024]{0}', space=vmem, size = 0x400, scoped, tag = 'output window, operand 0, single buffered']
    %10 = vsyncpa [#allocation3], 0
    %11 = vsyncpa [#allocation4], 0
    // Predicated region
    $region2: #{enc_fn.1} parent=1 // pred_check
      _
    $region3: #{enc_fn.1} parent=1 // pred_check_branch
      %13 = sbr.rel (0) target = $region5
    $region4: #{enc_fn.1} parent=1 // pred_region
      _
    $region5: #{enc_fn.1} parent=1 // pred_fallthru
      _
    // Predicated region
    $region6: #{enc_fn.1} parent=1 // pred_check
      _
    $region7: #{enc_fn.1} parent=1 // pred_check_branch
      %15 = sbr.rel (0) target = $region9
    $region8: #{enc_fn.1} parent=1 // pred_region
      %s17 = ssub.s32 16384, 16384
      %18 = vsyncadd [#allocation3], %s17
      %s19 = sshll.u32 [#allocation2], 4
      %s20 = int_to_ptr.vmem [resolvable:$true] %s19
      %25 = dma.hbm_to_vmem [thread:$0]  %s1, 16384, %s20, [#allocation3], 128, 128, 8
    $region9: #{enc_fn.1} parent=1 // pred_fallthru
      _
    // Predicated region
    $region10: #{enc_fn.1} parent=1 // pred_check
      _
    $region11: #{enc_fn.1} parent=1 // pred_check_branch
      %27 = sbr.rel (0) target = $region13
    $region12: #{enc_fn.1} parent=1 // pred_region
      _
    $region13: #{enc_fn.1} parent=1 // pred_fallthru
      _
    // Predicated region
    $region14: #{enc_fn.1} parent=1 // pred_check
      _
    $region15: #{enc_fn.1} parent=1 // pred_check_branch
      %29 = sbr.rel (0) target = $region17
    $region16: #{enc_fn.1} parent=1 // pred_region
      _
    $region17: #{enc_fn.1} parent=1 // pred_fallthru
      _
    // Predicated region
    $region18: #{enc_fn.1} parent=1 // pred_check
      _
    $region19: #{enc_fn.1} parent=1 // pred_check_branch
      %31 = sbr.rel (0) target = $region21
    $region20: #{enc_fn.1} parent=1 // pred_region
      _
    $region21: #{enc_fn.1} parent=1 // pred_fallthru
      _
    // Predicated region
    $region22: #{enc_fn.1} parent=1 // pred_check
      _
    $region23: #{enc_fn.1} parent=1 // pred_check_branch
      %33 = sbr.rel (0) target = $region25
    $region24: #{enc_fn.1} parent=1 // pred_region
      %34 = dma.done [#allocation3], 16384
    $region25: #{enc_fn.1} parent=1 // pred_fallthru
      _
    %v35 = vld [vmem:[%s0] sm:$0xff]
    %v36 = vld [vmem:[%s0 + $0x8] sm:$0xff]
    %v37 = vld [vmem:[#allocation2] sm:$0xff]
    %v38 = vld [vmem:[#allocation2 + $0x8] sm:$0xff]
    %v39 = vld [vmem:[#allocation2 + $0x10] sm:$0xff]
    %v40 = vld [vmem:[#allocation2 + $0x18] sm:$0xff]
    %v41 = vld [vmem:[#allocation2 + $0x20] sm:$0xff]
    %v42 = vld [vmem:[#allocation2 + $0x28] sm:$0xff]
    %v43 = vld [vmem:[#allocation2 + $0x30] sm:$0xff]
    %v44 = vld [vmem:[#allocation2 + $0x38] sm:$0xff]
    %v45 = vld [vmem:[#allocation2 + $0x40] sm:$0xff]
    %v46 = vld [vmem:[#allocation2 + $0x48] sm:$0xff]
    %v47 = vld [vmem:[#allocation2 + $0x50] sm:$0xff]
    %v48 = vld [vmem:[#allocation2 + $0x58] sm:$0xff]
    %v49 = vld [vmem:[#allocation2 + $0x60] sm:$0xff]
    %v50 = vld [vmem:[#allocation2 + $0x68] sm:$0xff]
    %v51 = vld [vmem:[#allocation2 + $0x70] sm:$0xff]
    %v52 = vld [vmem:[#allocation2 + $0x78] sm:$0xff]
    %v53 = vld [vmem:[#allocation2 + $0x80] sm:$0xff]
    %v54 = vld [vmem:[#allocation2 + $0x88] sm:$0xff]
    %v55 = vld [vmem:[#allocation2 + $0x90] sm:$0xff]
    %v56 = vld [vmem:[#allocation2 + $0x98] sm:$0xff]
    %v57 = vld [vmem:[#allocation2 + $0xa0] sm:$0xff]
    %v58 = vld [vmem:[#allocation2 + $0xa8] sm:$0xff]
    %v59 = vld [vmem:[#allocation2 + $0xb0] sm:$0xff]
    %v60 = vld [vmem:[#allocation2 + $0xb8] sm:$0xff]
    %v61 = vld [vmem:[#allocation2 + $0xc0] sm:$0xff]
    %v62 = vld [vmem:[#allocation2 + $0xc8] sm:$0xff]
    %v63 = vld [vmem:[#allocation2 + $0xd0] sm:$0xff]
    %v64 = vld [vmem:[#allocation2 + $0xd8] sm:$0xff]
    %v65 = vld [vmem:[#allocation2 + $0xe0] sm:$0xff]
    %v66 = vld [vmem:[#allocation2 + $0xe8] sm:$0xff]
    %v67 = vld [vmem:[#allocation2 + $0xf0] sm:$0xff]
    %v68 = vld [vmem:[#allocation2 + $0xf8] sm:$0xff]
    %v69 = vld [vmem:[#allocation2 + $0x100] sm:$0xff]
    %v70 = vld [vmem:[#allocation2 + $0x108] sm:$0xff]
    %v71 = vld [vmem:[#allocation2 + $0x110] sm:$0xff]
    %v72 = vld [vmem:[#allocation2 + $0x118] sm:$0xff]
    %v73 = vld [vmem:[#allocation2 + $0x120] sm:$0xff]
    %v74 = vld [vmem:[#allocation2 + $0x128] sm:$0xff]
    %v75 = vld [vmem:[#allocation2 + $0x130] sm:$0xff]
    %v76 = vld [vmem:[#allocation2 + $0x138] sm:$0xff]
    %v77 = vld [vmem:[#allocation2 + $0x140] sm:$0xff]
    %v78 = vld [vmem:[#allocation2 + $0x148] sm:$0xff]
    %v79 = vld [vmem:[#allocation2 + $0x150] sm:$0xff]
    %v80 = vld [vmem:[#allocation2 + $0x158] sm:$0xff]
    %v81 = vld [vmem:[#allocation2 + $0x160] sm:$0xff]
    %v82 = vld [vmem:[#allocation2 + $0x168] sm:$0xff]
    %v83 = vld [vmem:[#allocation2 + $0x170] sm:$0xff]
    %v84 = vld [vmem:[#allocation2 + $0x178] sm:$0xff]
    %v85 = vld [vmem:[#allocation2 + $0x180] sm:$0xff]
    %v86 = vld [vmem:[#allocation2 + $0x188] sm:$0xff]
    %v87 = vld [vmem:[#allocation2 + $0x190] sm:$0xff]
    %v88 = vld [vmem:[#allocation2 + $0x198] sm:$0xff]
    %v89 = vld [vmem:[#allocation2 + $0x1a0] sm:$0xff]
    %v90 = vld [vmem:[#allocation2 + $0x1a8] sm:$0xff]
    %v91 = vld [vmem:[#allocation2 + $0x1b0] sm:$0xff]
    %v92 = vld [vmem:[#allocation2 + $0x1b8] sm:$0xff]
    %v93 = vld [vmem:[#allocation2 + $0x1c0] sm:$0xff]
    %v94 = vld [vmem:[#allocation2 + $0x1c8] sm:$0xff]
    %v95 = vld [vmem:[#allocation2 + $0x1d0] sm:$0xff]
    %v96 = vld [vmem:[#allocation2 + $0x1d8] sm:$0xff]
    %v97 = vld [vmem:[#allocation2 + $0x1e0] sm:$0xff]
    %v98 = vld [vmem:[#allocation2 + $0x1e8] sm:$0xff]
    %v99 = vld [vmem:[#allocation2 + $0x1f0] sm:$0xff]
    %v100 = vld [vmem:[#allocation2 + $0x1f8] sm:$0xff]
    %v101 = vld [vmem:[#allocation2 + $0x200] sm:$0xff]
    %v102 = vld [vmem:[#allocation2 + $0x208] sm:$0xff]
    %v103 = vld [vmem:[#allocation2 + $0x210] sm:$0xff]
    %v104 = vld [vmem:[#allocation2 + $0x218] sm:$0xff]
    %v105 = vld [vmem:[#allocation2 + $0x220] sm:$0xff]
    %v106 = vld [vmem:[#allocation2 + $0x228] sm:$0xff]
    %v107 = vld [vmem:[#allocation2 + $0x230] sm:$0xff]
    %v108 = vld [vmem:[#allocation2 + $0x238] sm:$0xff]
    %v109 = vld [vmem:[#allocation2 + $0x240] sm:$0xff]
    %v110 = vld [vmem:[#allocation2 + $0x248] sm:$0xff]
    %v111 = vld [vmem:[#allocation2 + $0x250] sm:$0xff]
    %v112 = vld [vmem:[#allocation2 + $0x258] sm:$0xff]
    %v113 = vld [vmem:[#allocation2 + $0x260] sm:$0xff]
    %v114 = vld [vmem:[#allocation2 + $0x268] sm:$0xff]
    %v115 = vld [vmem:[#allocation2 + $0x270] sm:$0xff]
    %v116 = vld [vmem:[#allocation2 + $0x278] sm:$0xff]
    %v117 = vld [vmem:[#allocation2 + $0x280] sm:$0xff]
    %v118 = vld [vmem:[#allocation2 + $0x288] sm:$0xff]
    %v119 = vld [vmem:[#allocation2 + $0x290] sm:$0xff]
    %v120 = vld [vmem:[#allocation2 + $0x298] sm:$0xff]
    %v121 = vld [vmem:[#allocation2 + $0x2a0] sm:$0xff]
    %v122 = vld [vmem:[#allocation2 + $0x2a8] sm:$0xff]
    %v123 = vld [vmem:[#allocation2 + $0x2b0] sm:$0xff]
    %v124 = vld [vmem:[#allocation2 + $0x2b8] sm:$0xff]
    %v125 = vld [vmem:[#allocation2 + $0x2c0] sm:$0xff]
    %v126 = vld [vmem:[#allocation2 + $0x2c8] sm:$0xff]
    %v127 = vld [vmem:[#allocation2 + $0x2d0] sm:$0xff]
    %v128 = vld [vmem:[#allocation2 + $0x2d8] sm:$0xff]
    %v129 = vld [vmem:[#allocation2 + $0x2e0] sm:$0xff]
    %v130 = vld [vmem:[#allocation2 + $0x2e8] sm:$0xff]
    %v131 = vld [vmem:[#allocation2 + $0x2f0] sm:$0xff]
    %v132 = vld [vmem:[#allocation2 + $0x2f8] sm:$0xff]
    %v133 = vld [vmem:[#allocation2 + $0x300] sm:$0xff]
    %v134 = vld [vmem:[#allocation2 + $0x308] sm:$0xff]
    %v135 = vld [vmem:[#allocation2 + $0x310] sm:$0xff]
    %v136 = vld [vmem:[#allocation2 + $0x318] sm:$0xff]
    %v137 = vld [vmem:[#allocation2 + $0x320] sm:$0xff]
    %v138 = vld [vmem:[#allocation2 + $0x328] sm:$0xff]
    %v139 = vld [vmem:[#allocation2 + $0x330] sm:$0xff]
    %v140 = vld [vmem:[#allocation2 + $0x338] sm:$0xff]
    %v141 = vld [vmem:[#allocation2 + $0x340] sm:$0xff]
    %v142 = vld [vmem:[#allocation2 + $0x348] sm:$0xff]
    %v143 = vld [vmem:[#allocation2 + $0x350] sm:$0xff]
    %v144 = vld [vmem:[#allocation2 + $0x358] sm:$0xff]
    %v145 = vld [vmem:[#allocation2 + $0x360] sm:$0xff]
    %v146 = vld [vmem:[#allocation2 + $0x368] sm:$0xff]
    %v147 = vld [vmem:[#allocation2 + $0x370] sm:$0xff]
    %v148 = vld [vmem:[#allocation2 + $0x378] sm:$0xff]
    %v149 = vld [vmem:[#allocation2 + $0x380] sm:$0xff]
    %v150 = vld [vmem:[#allocation2 + $0x388] sm:$0xff]
    %v151 = vld [vmem:[#allocation2 + $0x390] sm:$0xff]
    %v152 = vld [vmem:[#allocation2 + $0x398] sm:$0xff]
    %v153 = vld [vmem:[#allocation2 + $0x3a0] sm:$0xff]
    %v154 = vld [vmem:[#allocation2 + $0x3a8] sm:$0xff]
    %v155 = vld [vmem:[#allocation2 + $0x3b0] sm:$0xff]
    %v156 = vld [vmem:[#allocation2 + $0x3b8] sm:$0xff]
    %v157 = vld [vmem:[#allocation2 + $0x3c0] sm:$0xff]
    %v158 = vld [vmem:[#allocation2 + $0x3c8] sm:$0xff]
    %v159 = vld [vmem:[#allocation2 + $0x3d0] sm:$0xff]
    %v160 = vld [vmem:[#allocation2 + $0x3d8] sm:$0xff]
    %v161 = vld [vmem:[#allocation2 + $0x3e0] sm:$0xff]
    %v162 = vld [vmem:[#allocation2 + $0x3e8] sm:$0xff]
    %v163 = vld [vmem:[#allocation2 + $0x3f0] sm:$0xff]
    %v164 = vld [vmem:[#allocation2 + $0x3f8] sm:$0xff]
    %v165 = vld [vmem:[%s2] sm:$0x1]
    %v167 = vlaneseq
    %v168 = vshrl.u32 %v167, 7
    %v169 = vsub.s32 0, %v168
    %v170 = vrot.slane %v165, %v169
    %v174 = vcombine.high %v35, %v35
    %v176 = vunpack.c.l.s4 1983009808
    %v177 = vunpack.c.0.s8 %v176
    %v178 = vlaneseq
    %v179 = vshrl.u32 %v178, 7
    %v180 = vsub.s32 %v177, %v179
    %v181 = vrot.slane %v35, %v180
    %v183 = vunpack.c.l.s4 1983009808
    %v184 = vunpack.c.0.s8 %v183
    %v185 = vlaneseq
    %v186 = vshrl.u32 %v185, 7
    %v187 = vsub.s32 %v184, %v186
    %v188 = vrot.slane %v174, %v187
    %v189 = vcombine.high %v181, %v181
    %v190 = vcombine.high %v188, %v188
    %v191 = vcombine.high %v36, %v36
    %v193 = vunpack.c.l.s4 1983009808
    %v194 = vunpack.c.0.s8 %v193
    %v195 = vlaneseq
    %v196 = vshrl.u32 %v195, 7
    %v197 = vsub.s32 %v194, %v196
    %v198 = vrot.slane %v36, %v197
    %v200 = vunpack.c.l.s4 1983009808
    %v201 = vunpack.c.0.s8 %v200
    %v202 = vlaneseq
    %v203 = vshrl.u32 %v202, 7
    %v204 = vsub.s32 %v201, %v203
    %v205 = vrot.slane %v191, %v204
    %v206 = vcombine.high %v198, %v198
    %v207 = vcombine.high %v205, %v205
    %216 = vmatprep.subr.mxu0 0.0
    %217 = vmatpush1.msra.mxu0 %v52
    %218 = vmatprep.subr.mxu0 0.0
    %219 = vmatpush1.msra.mxu0 %v51
    %220 = vmatprep.subr.mxu0 0.0
    %221 = vmatpush1.msra.mxu0 %v50
    %222 = vmatprep.subr.mxu0 0.0
    %223 = vmatpush1.msra.mxu0 %v49
    %224 = vmatprep.subr.mxu0 0.0
    %225 = vmatpush1.msra.mxu0 %v48
    %226 = vmatprep.subr.mxu0 0.0
    %227 = vmatpush1.msra.mxu0 %v47
    %228 = vmatprep.subr.mxu0 0.0
    %229 = vmatpush1.msra.mxu0 %v46
    %230 = vmatprep.subr.mxu0 0.0
    %231 = vmatpush1.msra.mxu0 %v45
    %232 = vmatprep.subr.mxu0 0.0
    %233 = vmatpush1.msra.mxu0 %v44
    %234 = vmatprep.subr.mxu0 0.0
    %235 = vmatpush1.msra.mxu0 %v43
    %236 = vmatprep.subr.mxu0 0.0
    %237 = vmatpush1.msra.mxu0 %v42
    %238 = vmatprep.subr.mxu0 0.0
    %239 = vmatpush1.msra.mxu0 %v41
    %240 = vmatprep.subr.mxu0 0.0
    %241 = vmatpush1.msra.mxu0 %v40
    %242 = vmatprep.subr.mxu0 0.0
    %243 = vmatpush1.msra.mxu0 %v39
    %244 = vmatprep.subr.mxu0 0.0
    %245 = vmatpush1.msra.mxu0 %v38
    %246 = vmatprep.subr.mxu0 0.0
    %247 = vmatpush1.msra.mxu0 %v37
    %248 = vmatprep.subr.mxu0 0.0
    %249 = vmatpush2.msra.mxu0 %v68
    %250 = vmatprep.subr.mxu0 0.0
    %251 = vmatpush2.msra.mxu0 %v67
    %252 = vmatprep.subr.mxu0 0.0
    %253 = vmatpush2.msra.mxu0 %v66
    %254 = vmatprep.subr.mxu0 0.0
    %255 = vmatpush2.msra.mxu0 %v65
    %256 = vmatprep.subr.mxu0 0.0
    %257 = vmatpush2.msra.mxu0 %v64
    %258 = vmatprep.subr.mxu0 0.0
    %259 = vmatpush2.msra.mxu0 %v63
    %260 = vmatprep.subr.mxu0 0.0
    %261 = vmatpush2.msra.mxu0 %v62
    %262 = vmatprep.subr.mxu0 0.0
    %263 = vmatpush2.msra.mxu0 %v61
    %264 = vmatprep.subr.mxu0 0.0
    %265 = vmatpush2.msra.mxu0 %v60
    %266 = vmatprep.subr.mxu0 0.0
    %267 = vmatpush2.msra.mxu0 %v59
    %268 = vmatprep.subr.mxu0 0.0
    %269 = vmatpush2.msra.mxu0 %v58
    %270 = vmatprep.subr.mxu0 0.0
    %271 = vmatpush2.msra.mxu0 %v57
    %272 = vmatprep.subr.mxu0 0.0
    %273 = vmatpush2.msra.mxu0 %v56
    %274 = vmatprep.subr.mxu0 0.0
    %275 = vmatpush2.msra.mxu0 %v55
    %276 = vmatprep.subr.mxu0 0.0
    %277 = vmatpush2.msra.mxu0 %v54
    %278 = vmatprep.subr.mxu0 0.0
    %279 = vmatpush2.msra.mxu0 %v53
    %280 = vmatprep.mubr.f32.mxu0 %v189
    %281 = vmatmul.mubr.f32.gmra.mxu0 %v181
    %v282 = vpop.f32.mrf.mxu0
    %v283 = vadd.f32 %v170, %v282
    %v284 = vpop.f32.mrf.mxu0
    %285 = vdwg.mxu0
    %286 = vmatprep.subr.mxu0 0.0
    %287 = vmatpush1.msra.mxu0 %v84
    %288 = vmatprep.subr.mxu0 0.0
    %289 = vmatpush1.msra.mxu0 %v83
    %290 = vmatprep.subr.mxu0 0.0
    %291 = vmatpush1.msra.mxu0 %v82
    %292 = vmatprep.subr.mxu0 0.0
    %293 = vmatpush1.msra.mxu0 %v81
    %294 = vmatprep.subr.mxu0 0.0
    %295 = vmatpush1.msra.mxu0 %v80
    %296 = vmatprep.subr.mxu0 0.0
    %297 = vmatpush1.msra.mxu0 %v79
    %298 = vmatprep.subr.mxu0 0.0
    %299 = vmatpush1.msra.mxu0 %v78
    %300 = vmatprep.subr.mxu0 0.0
    %301 = vmatpush1.msra.mxu0 %v77
    %302 = vmatprep.subr.mxu0 0.0
    %303 = vmatpush1.msra.mxu0 %v76
    %304 = vmatprep.subr.mxu0 0.0
    %305 = vmatpush1.msra.mxu0 %v75
    %306 = vmatprep.subr.mxu0 0.0
    %307 = vmatpush1.msra.mxu0 %v74
    %308 = vmatprep.subr.mxu0 0.0
    %309 = vmatpush1.msra.mxu0 %v73
    %310 = vmatprep.subr.mxu0 0.0
    %311 = vmatpush1.msra.mxu0 %v72
    %312 = vmatprep.subr.mxu0 0.0
    %313 = vmatpush1.msra.mxu0 %v71
    %314 = vmatprep.subr.mxu0 0.0
    %315 = vmatpush1.msra.mxu0 %v70
    %316 = vmatprep.subr.mxu0 0.0
    %317 = vmatpush1.msra.mxu0 %v69
    %318 = vmatprep.subr.mxu0 0.0
    %319 = vmatpush2.msra.mxu0 %v100
    %320 = vmatprep.subr.mxu0 0.0
    %321 = vmatpush2.msra.mxu0 %v99
    %322 = vmatprep.subr.mxu0 0.0
    %323 = vmatpush2.msra.mxu0 %v98
    %324 = vmatprep.subr.mxu0 0.0
    %325 = vmatpush2.msra.mxu0 %v97
    %326 = vmatprep.subr.mxu0 0.0
    %327 = vmatpush2.msra.mxu0 %v96
    %328 = vmatprep.subr.mxu0 0.0
    %329 = vmatpush2.msra.mxu0 %v95
    %330 = vmatprep.subr.mxu0 0.0
    %331 = vmatpush2.msra.mxu0 %v94
    %332 = vmatprep.subr.mxu0 0.0
    %333 = vmatpush2.msra.mxu0 %v93
    %334 = vmatprep.subr.mxu0 0.0
    %335 = vmatpush2.msra.mxu0 %v92
    %336 = vmatprep.subr.mxu0 0.0
    %337 = vmatpush2.msra.mxu0 %v91
    %338 = vmatprep.subr.mxu0 0.0
    %339 = vmatpush2.msra.mxu0 %v90
    %340 = vmatprep.subr.mxu0 0.0
    %341 = vmatpush2.msra.mxu0 %v89
    %342 = vmatprep.subr.mxu0 0.0
    %343 = vmatpush2.msra.mxu0 %v88
    %344 = vmatprep.subr.mxu0 0.0
    %345 = vmatpush2.msra.mxu0 %v87
    %346 = vmatprep.subr.mxu0 0.0
    %347 = vmatpush2.msra.mxu0 %v86
    %348 = vmatprep.subr.mxu0 0.0
    %349 = vmatpush2.msra.mxu0 %v85
    %350 = vmatprep.mubr.f32.mxu0 %v190
    %351 = vmatmul.mubr.f32.gmra.mxu0 %v188
    %v352 = vpop.f32.mrf.mxu0
    %v353 = vadd.f32 %v283, %v352
    %v354 = vpop.f32.mrf.mxu0
    %355 = vdwg.mxu0
    %356 = vmatprep.subr.mxu0 0.0
    %357 = vmatpush1.msra.mxu0 %v116
    %358 = vmatprep.subr.mxu0 0.0
    %359 = vmatpush1.msra.mxu0 %v115
    %360 = vmatprep.subr.mxu0 0.0
    %361 = vmatpush1.msra.mxu0 %v114
    %362 = vmatprep.subr.mxu0 0.0
    %363 = vmatpush1.msra.mxu0 %v113
    %364 = vmatprep.subr.mxu0 0.0
    %365 = vmatpush1.msra.mxu0 %v112
    %366 = vmatprep.subr.mxu0 0.0
    %367 = vmatpush1.msra.mxu0 %v111
    %368 = vmatprep.subr.mxu0 0.0
    %369 = vmatpush1.msra.mxu0 %v110
    %370 = vmatprep.subr.mxu0 0.0
    %371 = vmatpush1.msra.mxu0 %v109
    %372 = vmatprep.subr.mxu0 0.0
    %373 = vmatpush1.msra.mxu0 %v108
    %374 = vmatprep.subr.mxu0 0.0
    %375 = vmatpush1.msra.mxu0 %v107
    %376 = vmatprep.subr.mxu0 0.0
    %377 = vmatpush1.msra.mxu0 %v106
    %378 = vmatprep.subr.mxu0 0.0
    %379 = vmatpush1.msra.mxu0 %v105
    %380 = vmatprep.subr.mxu0 0.0
    %381 = vmatpush1.msra.mxu0 %v104
    %382 = vmatprep.subr.mxu0 0.0
    %383 = vmatpush1.msra.mxu0 %v103
    %384 = vmatprep.subr.mxu0 0.0
    %385 = vmatpush1.msra.mxu0 %v102
    %386 = vmatprep.subr.mxu0 0.0
    %387 = vmatpush1.msra.mxu0 %v101
    %388 = vmatprep.subr.mxu0 0.0
    %389 = vmatpush2.msra.mxu0 %v132
    %390 = vmatprep.subr.mxu0 0.0
    %391 = vmatpush2.msra.mxu0 %v131
    %392 = vmatprep.subr.mxu0 0.0
    %393 = vmatpush2.msra.mxu0 %v130
    %394 = vmatprep.subr.mxu0 0.0
    %395 = vmatpush2.msra.mxu0 %v129
    %396 = vmatprep.subr.mxu0 0.0
    %397 = vmatpush2.msra.mxu0 %v128
    %398 = vmatprep.subr.mxu0 0.0
    %399 = vmatpush2.msra.mxu0 %v127
    %400 = vmatprep.subr.mxu0 0.0
    %401 = vmatpush2.msra.mxu0 %v126
    %402 = vmatprep.subr.mxu0 0.0
    %403 = vmatpush2.msra.mxu0 %v125
    %404 = vmatprep.subr.mxu0 0.0
    %405 = vmatpush2.msra.mxu0 %v124
    %406 = vmatprep.subr.mxu0 0.0
    %407 = vmatpush2.msra.mxu0 %v123
    %408 = vmatprep.subr.mxu0 0.0
    %409 = vmatpush2.msra.mxu0 %v122
    %410 = vmatprep.subr.mxu0 0.0
    %411 = vmatpush2.msra.mxu0 %v121
    %412 = vmatprep.subr.mxu0 0.0
    %413 = vmatpush2.msra.mxu0 %v120
    %414 = vmatprep.subr.mxu0 0.0
    %415 = vmatpush2.msra.mxu0 %v119
    %416 = vmatprep.subr.mxu0 0.0
    %417 = vmatpush2.msra.mxu0 %v118
    %418 = vmatprep.subr.mxu0 0.0
    %419 = vmatpush2.msra.mxu0 %v117
    %420 = vmatprep.mubr.f32.mxu0 %v206
    %421 = vmatmul.mubr.f32.gmra.mxu0 %v198
    %v422 = vpop.f32.mrf.mxu0
    %v423 = vadd.f32 %v353, %v422
    %v424 = vpop.f32.mrf.mxu0
    %425 = vdwg.mxu0
    %426 = vmatprep.subr.mxu0 0.0
    %427 = vmatpush1.msra.mxu0 %v148
    %428 = vmatprep.subr.mxu0 0.0
    %429 = vmatpush1.msra.mxu0 %v147
    %430 = vmatprep.subr.mxu0 0.0
    %431 = vmatpush1.msra.mxu0 %v146
    %432 = vmatprep.subr.mxu0 0.0
    %433 = vmatpush1.msra.mxu0 %v145
    %434 = vmatprep.subr.mxu0 0.0
    %435 = vmatpush1.msra.mxu0 %v144
    %436 = vmatprep.subr.mxu0 0.0
    %437 = vmatpush1.msra.mxu0 %v143
    %438 = vmatprep.subr.mxu0 0.0
    %439 = vmatpush1.msra.mxu0 %v142
    %440 = vmatprep.subr.mxu0 0.0
    %441 = vmatpush1.msra.mxu0 %v141
    %442 = vmatprep.subr.mxu0 0.0
    %443 = vmatpush1.msra.mxu0 %v140
    %444 = vmatprep.subr.mxu0 0.0
    %445 = vmatpush1.msra.mxu0 %v139
    %446 = vmatprep.subr.mxu0 0.0
    %447 = vmatpush1.msra.mxu0 %v138
    %448 = vmatprep.subr.mxu0 0.0
    %449 = vmatpush1.msra.mxu0 %v137
    %450 = vmatprep.subr.mxu0 0.0
    %451 = vmatpush1.msra.mxu0 %v136
    %452 = vmatprep.subr.mxu0 0.0
    %453 = vmatpush1.msra.mxu0 %v135
    %454 = vmatprep.subr.mxu0 0.0
    %455 = vmatpush1.msra.mxu0 %v134
    %456 = vmatprep.subr.mxu0 0.0
    %457 = vmatpush1.msra.mxu0 %v133
    %458 = vmatprep.subr.mxu0 0.0
    %459 = vmatpush2.msra.mxu0 %v164
    %460 = vmatprep.subr.mxu0 0.0
    %461 = vmatpush2.msra.mxu0 %v163
    %462 = vmatprep.subr.mxu0 0.0
    %463 = vmatpush2.msra.mxu0 %v162
    %464 = vmatprep.subr.mxu0 0.0
    %465 = vmatpush2.msra.mxu0 %v161
    %466 = vmatprep.subr.mxu0 0.0
    %467 = vmatpush2.msra.mxu0 %v160
    %468 = vmatprep.subr.mxu0 0.0
    %469 = vmatpush2.msra.mxu0 %v159
    %470 = vmatprep.subr.mxu0 0.0
    %471 = vmatpush2.msra.mxu0 %v158
    %472 = vmatprep.subr.mxu0 0.0
    %473 = vmatpush2.msra.mxu0 %v157
    %474 = vmatprep.subr.mxu0 0.0
    %475 = vmatpush2.msra.mxu0 %v156
    %476 = vmatprep.subr.mxu0 0.0
    %477 = vmatpush2.msra.mxu0 %v155
    %478 = vmatprep.subr.mxu0 0.0
    %479 = vmatpush2.msra.mxu0 %v154
    %480 = vmatprep.subr.mxu0 0.0
    %481 = vmatpush2.msra.mxu0 %v153
    %482 = vmatprep.subr.mxu0 0.0
    %483 = vmatpush2.msra.mxu0 %v152
    %484 = vmatprep.subr.mxu0 0.0
    %485 = vmatpush2.msra.mxu0 %v151
    %486 = vmatprep.subr.mxu0 0.0
    %487 = vmatpush2.msra.mxu0 %v150
    %488 = vmatprep.subr.mxu0 0.0
    %489 = vmatpush2.msra.mxu0 %v149
    %490 = vmatprep.mubr.f32.mxu0 %v207
    %491 = vmatmul.mubr.f32.gmra.mxu0 %v205
    %v492 = vpop.f32.mrf.mxu0
    %v493 = vadd.f32 %v423, %v492
    %v494 = vpop.f32.mrf.mxu0
    %495 = vdwg.mxu0
    %v496 = vmax.f32 %v493, 0.0
    %v497 = vld [vmem:[%s3] sm:$0xff]
    %v498 = vld [vmem:[%s3 + $0x8] sm:$0xff]
    %v499 = vld [vmem:[%s3 + $0x10] sm:$0xff]
    %v500 = vld [vmem:[%s3 + $0x18] sm:$0xff]
    %v501 = vld [vmem:[%s4] sm:$0x1]
    %v503 = vlaneseq
    %v504 = vshrl.u32 %v503, 7
    %v505 = vsub.s32 0, %v504
    %v506 = vrot.slane %v501, %v505
    %vm508 = vcmask 261120
    %v510 = vsel %vm508, %v496, 0
    %512 = vmatprep.subr.mxu0 0.0
    %513 = vmatpush1.msra.mxu0 0.0
    %514 = vmatprep.subr.mxu0 0.0
    %515 = vmatpush1.msra.mxu0 0.0
    %516 = vmatprep.subr.mxu0 0.0
    %517 = vmatpush1.msra.mxu0 0.0
    %518 = vmatprep.subr.mxu0 0.0
    %519 = vmatpush1.msra.mxu0 0.0
    %520 = vmatprep.subr.mxu0 0.0
    %521 = vmatpush1.msra.mxu0 0.0
    %522 = vmatprep.subr.mxu0 0.0
    %523 = vmatpush1.msra.mxu0 0.0
    %524 = vmatprep.subr.mxu0 0.0
    %525 = vmatpush1.msra.mxu0 0.0
    %526 = vmatprep.subr.mxu0 0.0
    %527 = vmatpush1.msra.mxu0 0.0
    %528 = vmatprep.subr.mxu0 0.0
    %529 = vmatpush1.msra.mxu0 0.0
    %530 = vmatprep.subr.mxu0 0.0
    %531 = vmatpush1.msra.mxu0 0.0
    %532 = vmatprep.subr.mxu0 0.0
    %533 = vmatpush1.msra.mxu0 0.0
    %534 = vmatprep.subr.mxu0 0.0
    %535 = vmatpush1.msra.mxu0 0.0
    %536 = vmatprep.subr.mxu0 0.0
    %537 = vmatpush1.msra.mxu0 %v500
    %538 = vmatprep.subr.mxu0 0.0
    %539 = vmatpush1.msra.mxu0 %v499
    %540 = vmatprep.subr.mxu0 0.0
    %541 = vmatpush1.msra.mxu0 %v498
    %542 = vmatprep.subr.mxu0 0.0
    %543 = vmatpush1.msra.mxu0 %v497
    %544 = vmatprep.subr.mxu0 0.0
    %545 = vmatpush2.msra.mxu0 0.0
    %546 = vmatprep.subr.mxu0 0.0
    %547 = vmatpush2.msra.mxu0 0.0
    %548 = vmatprep.subr.mxu0 0.0
    %549 = vmatpush2.msra.mxu0 0.0
    %550 = vmatprep.subr.mxu0 0.0
    %551 = vmatpush2.msra.mxu0 0.0
    %552 = vmatprep.subr.mxu0 0.0
    %553 = vmatpush2.msra.mxu0 0.0
    %554 = vmatprep.subr.mxu0 0.0
    %555 = vmatpush2.msra.mxu0 0.0
    %556 = vmatprep.subr.mxu0 0.0
    %557 = vmatpush2.msra.mxu0 0.0
    %558 = vmatprep.subr.mxu0 0.0
    %559 = vmatpush2.msra.mxu0 0.0
    %560 = vmatprep.subr.mxu0 0.0
    %561 = vmatpush2.msra.mxu0 0.0
    %562 = vmatprep.subr.mxu0 0.0
    %563 = vmatpush2.msra.mxu0 0.0
    %564 = vmatprep.subr.mxu0 0.0
    %565 = vmatpush2.msra.mxu0 0.0
    %566 = vmatprep.subr.mxu0 0.0
    %567 = vmatpush2.msra.mxu0 0.0
    %568 = vmatprep.subr.mxu0 0.0
    %569 = vmatpush2.msra.mxu0 0.0
    %570 = vmatprep.subr.mxu0 0.0
    %571 = vmatpush2.msra.mxu0 0.0
    %572 = vmatprep.subr.mxu0 0.0
    %573 = vmatpush2.msra.mxu0 0.0
    %574 = vmatprep.subr.mxu0 0.0
    %575 = vmatpush2.msra.mxu0 0.0
    %576 = vmatprep.mubr.f32.mxu0 0.0
    %577 = vmatmul.mubr.f32.gmra.mxu0 %v510
    %v578 = vpop.f32.mrf.mxu0
    %v579 = vadd.f32 %v506, %v578
    %v580 = vpop.f32.mrf.mxu0
    %581 = vdwg.mxu0
    %vm582 = vcmask 123904
    %583 = vst.msk [vmem:[#allocation5] sm:$0x3] %vm582, %v579
    // Predicated region
    $region26: #{enc_fn.1} parent=1 // pred_check
      _
    $region27: #{enc_fn.1} parent=1 // pred_check_branch
      %585 = sbr.rel (0) target = $region29
    $region28: #{enc_fn.1} parent=1 // pred_region
      %s587 = ssub.s32 32, 32
      %588 = vsyncadd [#allocation4], %s587
      %s590 = sshll.u32 [#allocation5], 4
      %s591 = int_to_ptr.vmem [resolvable:$true] %s590
      %593 = dma.vmem_to_hbm [thread:$0]  %s591, 32, %s5, [#allocation4]
    $region29: #{enc_fn.1} parent=1 // pred_fallthru
      _
    // Predicated region
    $region30: #{enc_fn.1} parent=1 // pred_check
      _
    $region31: #{enc_fn.1} parent=1 // pred_check_branch
      %595 = sbr.rel (0) target = $region33
    $region32: #{enc_fn.1} parent=1 // pred_region
      %596 = dma.done [#allocation4], 32
    $region33: #{enc_fn.1} parent=1 // pred_fallthru
      _
    %597 = vsyncpa [#allocation3], 1
    %598 = vsyncpa [#allocation4], 1

</llo_original>
